<compile_context>
chip_gen: v7x
topology: tpu7x:2x2x1
jax: 0.10.0
libtpu: 0.0.40
codegen_flags: <defaults>
</compile_context>

<pallas_src>
import jax
import jax.numpy as jnp
from jax import lax
from jax.experimental import pallas as pl
from jax.experimental.pallas import tpu as pltpu
import numpy as np


_SQUASH_EPS = 1e-12  # guards |v| = 0 (the raw PyTorch squash would NaN there)


def _squash(y, sq):
    # squash(v) = |v|^2 / (1 + |v|^2) * v / |v|;  sq = |v|^2 broadcast to y's shape.
    return (sq / (1.0 + sq)) * y * lax.rsqrt(sq + _SQUASH_EPS)


# ---------------------------------------------------------------------------
# Pallas kernels
# ---------------------------------------------------------------------------
def _make_caps_kernel(batch_tile, fuse_squash):
    """Per-batch GEMM with K-tiled accumulation.

    grid = (batch_tiles, k_tiles).  For each batch b in the tile:
        acc[b] (N, OH*OW) += W (N, tk) @ patches_b (tk, OH*OW)
    On the last K step the epilogue adds the bias and (if fuse_squash) applies
    squash() lane-locally: the per-capsule squared norm is obtained with one
    (OH*OW, OH*OW) block-diagonal-ones matmul, avoiding any in-kernel reshape.
    """

    def kernel(p_ref, w_ref, b_ref, *rest):
        if fuse_squash:
            g_ref, out_ref, acc_ref = rest
        else:
            out_ref, acc_ref = rest

        k = pl.program_id(1)

        @pl.when(k == 0)
        def _init():
            acc_ref[...] = jnp.zeros_like(acc_ref)

        w = w_ref[...]                                    # (N, tk), f32 or bf16
        for i in range(batch_tile):                       # static unroll
            acc_ref[i] += jnp.dot(w, p_ref[i],
                                  preferred_element_type=jnp.float32)

        @pl.when(k == pl.num_programs(1) - 1)
        def _finalize():
            bias_col = b_ref[...]                         # (N, 1), f32
            if fuse_squash:
                g = g_ref[...]                            # (OHW, OHW) block-diag ones
            for i in range(batch_tile):
                y = acc_ref[i] + bias_col                 # (N, OHW), f32
                if fuse_squash:
                    sq = jnp.dot(y * y, g, preferred_element_type=jnp.float32)
                    out_ref[i] = _squash(y, sq)
                else:
                    out_ref[i] = y

    return kernel


def _squash_kernel(v_ref, o_ref):
    # Fallback (only used when OH*OW is not a multiple of pixel_each_capsule):
    # row-tiled squash over (rows, pixel) with the capsule dim reduced per row.
    v = v_ref[...]
    sq = jnp.sum(v * v, axis=-1, keepdims=True)
    o_ref[...] = _squash(v, sq)


# ---------------------------------------------------------------------------
# Forward wrapper
# ---------------------------------------------------------------------------
def primary_caps_forward(x, weights, bias, *, conv_stride, pixel_each_capsule,
                         compute_dtype=jnp.float32, batch_tile=None, k_tile=None):
    """
    x       : (B, C_in, H, W)  float32, NCHW (PyTorch convention)
    weights : (n_convs, out_ch, C_in, K, K)
    bias    : (n_convs, out_ch)
    compute_dtype : dtype fed to the MXU (bf16 recommended on v6e/v7x);
                    accumulation and the squash epilogue stay float32.
    returns : (B, n_node, pixel_each_capsule)  squashed capsule vectors
    """
    n_convs, out_ch, C_in, K, _ = weights.shape
    B, _, H, W = x.shape
    OH = (H - K) // conv_stride + 1
    OW = (W - K) // conv_stride + 1
    OHW = OH * OW
    N = n_convs * out_ch
    Kd = C_in * K * K
    total = N * OHW
    assert total % pixel_each_capsule == 0
    n_node = total // pixel_each_capsule

    # -- patch extraction: one XLA conv, feature order (c, kh, kw) ------------
    patches = lax.conv_general_dilated_patches(
        x, (K, K), (conv_stride, conv_stride), "VALID",
        dimension_numbers=("NCHW", "OIHW", "NCHW"))        # (B, Kd, OH, OW)
    patches = patches.reshape(B, Kd, OHW)                  # free (contiguous) view

    # -- tiling ---------------------------------------------------------------
    if k_tile is None:
        k_tile = 512 if Kd >= 512 else 128                 # 128-granular (MXU/lane aligned)
    Kd_pad = pl.cdiv(Kd, k_tile) * k_tile
    if batch_tile is None:
        batch_tile = min(B, 8)                             # amortizes W re-fetch across batches
    B_pad = pl.cdiv(B, batch_tile) * batch_tile

    if Kd_pad != Kd or B_pad != B:
        patches = jnp.pad(patches, ((0, B_pad - B), (0, Kd_pad - Kd), (0, 0)))
    w_mat = weights.reshape(N, Kd)                         # (N, Kd), (c, kh, kw) column order
    if Kd_pad != Kd:
        w_mat = jnp.pad(w_mat, ((0, 0), (0, Kd_pad - Kd)))

    patches = patches.astype(compute_dtype)                # bf16 halves DMA bytes on v6e/v7x
    w_mat = w_mat.astype(compute_dtype)
    b_col = bias.reshape(N, 1).astype(jnp.float32)

    nb = B_pad // batch_tile
    nk = Kd_pad // k_tile
    fuse = (OHW % pixel_each_capsule == 0)                 # capsules never straddle rows

    in_specs = [
        pl.BlockSpec((batch_tile, k_tile, OHW), lambda b, k: (b, k, 0)),
        pl.BlockSpec((N, k_tile), lambda b, k: (0, k)),
        pl.BlockSpec((N, 1), lambda b, k: (0, 0)),
    ]
    inputs = [patches, w_mat, b_col]
    if fuse:
        grp = jnp.arange(OHW) // pixel_each_capsule
        block_ones = (grp[:, None] == grp[None, :]).astype(jnp.float32)   # (OHW, OHW)
        in_specs.append(pl.BlockSpec((OHW, OHW), lambda b, k: (0, 0)))
        inputs.append(block_ones)

    conv_out = pl.pallas_call(
        _make_caps_kernel(batch_tile, fuse),
        out_shape=jax.ShapeDtypeStruct((B_pad, N, OHW), jnp.float32),
        grid_spec=pltpu.PrefetchScalarGridSpec(
            num_scalar_prefetch=0,
            grid=(nb, nk),                                  # reduction (K) axis last
            in_specs=in_specs,
            out_specs=pl.BlockSpec((batch_tile, N, OHW), lambda b, k: (b, 0, 0)),
            scratch_shapes=[pltpu.VMEM((batch_tile, N, OHW), jnp.float32)]),
        compiler_params=pltpu.CompilerParams(
            dimension_semantics=("parallel", "arbitrary"),  # megacore-shard batch on v7x
            vmem_limit_bytes=32 * 1024 * 1024),             # fits v7x's 64 MiB VMEM w/ headroom
    )(*inputs)

    conv_out = conv_out[:B]                                 # drop batch padding (if any)

    if fuse:
        # (B, n_convs*out_ch, OH*OW) -> (B, n_node, pixel): same bytes, free view.
        return conv_out.reshape(B, n_node, pixel_each_capsule)

    # -- fallback squash (e.g. real CapsNet 6x6 spatial where 36 % 8 != 0) ----
    vec = conv_out.reshape(B * n_node, pixel_each_capsule)
    rows = vec.shape[0]
    tr = 256
    rows_pad = pl.cdiv(rows, tr) * tr
    if rows_pad != rows:
        vec = jnp.pad(vec, ((0, rows_pad - rows), (0, 0)))
    squashed = pl.pallas_call(
        _squash_kernel,
        out_shape=jax.ShapeDtypeStruct((rows_pad, pixel_each_capsule), jnp.float32),
        grid_spec=pltpu.PrefetchScalarGridSpec(
            num_scalar_prefetch=0,
            grid=(rows_pad // tr,),
            in_specs=[pl.BlockSpec((tr, pixel_each_capsule), lambda i: (i, 0))],
            out_specs=pl.BlockSpec((tr, pixel_each_capsule), lambda i: (i, 0))),
        compiler_params=pltpu.CompilerParams(
            dimension_semantics=("parallel",)),
    )(vec)
    return squashed[:rows].reshape(B, n_node, pixel_each_capsule)


# ---------------------------------------------------------------------------
# Pure-JAX reference (mirrors the PyTorch forward) for correctness checking
# ---------------------------------------------------------------------------
def primary_caps_reference(x, weights, bias, *, conv_stride, pixel_each_capsule):
    n_convs = weights.shape[0]
    outs = []
    for i in range(n_convs):
        o = lax.conv_general_dilated(
            x, weights[i], (conv_stride, conv_stride), "VALID",
            dimension_numbers=("NCHW", "OIHW", "NCHW"))
        outs.append(o + bias[i][None, :, None, None])
    caps = jnp.stack(outs, axis=1)                          # (B, n_convs, oc, OH, OW)
    v = caps.reshape(x.shape[0], -1, pixel_each_capsule)
    sq = jnp.sum(v * v, axis=-1, keepdims=True)
    return sq / (1.0 + sq) * v / jnp.sqrt(sq)


# ---------------------------------------------------------------------------
if __name__ == "__main__":
    # Small shapes consistent with the module (scaled down from 256ch / 20x20).
    B, C_in, H, W = 2, 16, 9, 9
    pixel_each_capsule = 8
    out_ch = C_in // pixel_each_capsule      # = 2 (integer division, module intent)
    n_convs = 10
    K, stride = 3, 2

    key = jax.random.PRNGKey(0)
    kx, kw, kb = jax.random.split(key, 3)
    x = jax.random.normal(kx, (B, C_in, H, W), dtype=jnp.float32)
    weights = 0.1 * jax.random.normal(kw, (n_convs, out_ch, C_in, K, K), dtype=jnp.float32)
    bias = 0.1 * jax.random.normal(kb, (n_convs, out_ch), dtype=jnp.float32)

    fwd = jax.jit(primary_caps_forward,
                  static_argnames=("conv_stride", "pixel_each_capsule",
                                   "compute_dtype", "batch_tile", "k_tile"))

    ref = primary_caps_reference(x, weights, bias, conv_stride=stride,
                                 pixel_each_capsule=pixel_each_capsule)

    # f32 MXU path: tight tolerance against the pure-JAX reference.
    out = jax.block_until_ready(
        fwd(x, weights, bias, conv_stride=stride,
            pixel_each_capsule=pixel_each_capsule))
    np.testing.assert_allclose(np.asarray(out), np.asarray(ref), rtol=1e-5, atol=1e-5)

    # bf16 MXU path (the recommended setting on v6e/v7x at production sizes).
    out_bf16 = jax.block_until_ready(
        fwd(x, weights, bias, conv_stride=stride,
            pixel_each_capsule=pixel_each_capsule, compute_dtype=jnp.bfloat16))
    np.testing.assert_allclose(np.asarray(out_bf16), np.asarray(ref), rtol=5e-2, atol=5e-2)

    print("KERNEL_OK")
</pallas_src>

<mosaic_0001>
module attributes {stable_mosaic.version = 11 : i64} {
  func.func @kernel(%arg0: i32, %arg1: i32, %arg2: memref<2x128x16xf32, #tpu.memory_space<vmem>>, %arg3: memref<20x128xf32, #tpu.memory_space<vmem>>, %arg4: memref<20x1xf32, #tpu.memory_space<vmem>>, %arg5: memref<16x16xf32, #tpu.memory_space<vmem>>, %arg6: memref<2x20x16xf32, #tpu.memory_space<vmem>>, %arg7: memref<2x20x16xf32, #tpu.memory_space<vmem>>) attributes {dimension_semantics = [#tpu.dimension_semantics<parallel>, #tpu.dimension_semantics<arbitrary>], iteration_bounds = array<i64: 1, 2>, scalar_prefetch = 0 : i64, scratch_operands = 1 : i64, tpu.core_type = #tpu.core_type<tc>, window_params = [{transform_indices = @transform_0, window_bounds = array<i64: 2, 128, 16>}, {transform_indices = @transform_1, window_bounds = array<i64: 20, 128>}, {pipeline_mode = #tpu.pipeline_mode<synchronous>, transform_indices = @transform_2, window_bounds = array<i64: 20, 1>}, {pipeline_mode = #tpu.pipeline_mode<synchronous>, transform_indices = @transform_3, window_bounds = array<i64: 16, 16>}, {transform_indices = @transform_4, window_bounds = array<i64: 2, 20, 16>}]} {
    %c0_i32 = arith.constant 0 : i32
    %0 = arith.cmpi eq, %arg1, %c0_i32 : i32
    %1 = arith.extui %0 : i1 to i32
    %c0_i32_0 = arith.constant 0 : i32
    %2 = arith.cmpi ne, %1, %c0_i32_0 : i32
    scf.if %2 {
      %cst_21 = arith.constant 0.000000e+00 : f32
      %25 = vector.broadcast %cst_21 : f32 to vector<2x20x16xf32>
      %c0_22 = arith.constant 0 : index
      %c0_23 = arith.constant 0 : index
      %c0_24 = arith.constant 0 : index
      %26 = vector.load %arg7[%c0_22, %c0_23, %c0_24] : memref<2x20x16xf32, #tpu.memory_space<vmem>>, vector<2x20x16xf32>
      tpu.vector_store %arg7[%c0_22, %c0_23, %c0_24], %25 {strides = array<i32>} : memref<2x20x16xf32, #tpu.memory_space<vmem>>, vector<2x20x16xf32>,
    } else {
    }
    %c0 = arith.constant 0 : index
    %c0_1 = arith.constant 0 : index
    %3 = vector.load %arg3[%c0, %c0_1] : memref<20x128xf32, #tpu.memory_space<vmem>>, vector<20x128xf32>
    %c0_2 = arith.constant 0 : index
    %c0_3 = arith.constant 0 : index
    %c0_4 = arith.constant 0 : index
    %4 = vector.load %arg7[%c0_2, %c0_3, %c0_4] : memref<2x20x16xf32, #tpu.memory_space<vmem>>, vector<1x20x16xf32>
    %5 = vector.shape_cast %4 : vector<1x20x16xf32> to vector<20x16xf32>
    %c0_5 = arith.constant 0 : index
    %c0_6 = arith.constant 0 : index
    %c0_7 = arith.constant 0 : index
    %6 = vector.load %arg2[%c0_5, %c0_6, %c0_7] : memref<2x128x16xf32, #tpu.memory_space<vmem>>, vector<1x128x16xf32>
    %7 = vector.shape_cast %6 : vector<1x128x16xf32> to vector<128x16xf32>
    %cst = arith.constant dense<0.000000e+00> : vector<20x16xf32>
    %8 = tpu.matmul %3, %7, %cst {dimension_numbers = #tpu.dot_dimension_numbers<[1], [0], [0], [1], [0, 0, 1, 1], [], []>} : vector<20x128xf32>, vector<128x16xf32>, vector<20x16xf32> -> vector<20x16xf32>
    %9 = arith.addf %5, %8 : vector<20x16xf32>
    %c0_8 = arith.constant 0 : index
    %c0_9 = arith.constant 0 : index
    %c0_10 = arith.constant 0 : index
    %10 = vector.load %arg7[%c0_8, %c0_9, %c0_10] : memref<2x20x16xf32, #tpu.memory_space<vmem>>, vector<1x20x16xf32>
    %11 = vector.shape_cast %10 : vector<1x20x16xf32> to vector<20x16xf32>
    %12 = vector.shape_cast %9 : vector<20x16xf32> to vector<1x20x16xf32>
    tpu.vector_store %arg7[%c0_8, %c0_9, %c0_10], %12 {strides = array<i32>} : memref<2x20x16xf32, #tpu.memory_space<vmem>>, vector<1x20x16xf32>,
    %c1 = arith.constant 1 : index
    %c0_11 = arith.constant 0 : index
    %c0_12 = arith.constant 0 : index
    %13 = vector.load %arg7[%c1, %c0_11, %c0_12] : memref<2x20x16xf32, #tpu.memory_space<vmem>>, vector<1x20x16xf32>
    %14 = vector.shape_cast %13 : vector<1x20x16xf32> to vector<20x16xf32>
    %c1_13 = arith.constant 1 : index
    %c0_14 = arith.constant 0 : index
    %c0_15 = arith.constant 0 : index
    %15 = vector.load %arg2[%c1_13, %c0_14, %c0_15] : memref<2x128x16xf32, #tpu.memory_space<vmem>>, vector<1x128x16xf32>
    %16 = vector.shape_cast %15 : vector<1x128x16xf32> to vector<128x16xf32>
    %cst_16 = arith.constant dense<0.000000e+00> : vector<20x16xf32>
    %17 = tpu.matmul %3, %16, %cst_16 {dimension_numbers = #tpu.dot_dimension_numbers<[1], [0], [0], [1], [0, 0, 1, 1], [], []>} : vector<20x128xf32>, vector<128x16xf32>, vector<20x16xf32> -> vector<20x16xf32>
    %18 = arith.addf %14, %17 : vector<20x16xf32>
    %c1_17 = arith.constant 1 : index
    %c0_18 = arith.constant 0 : index
    %c0_19 = arith.constant 0 : index
    %19 = vector.load %arg7[%c1_17, %c0_18, %c0_19] : memref<2x20x16xf32, #tpu.memory_space<vmem>>, vector<1x20x16xf32>
    %20 = vector.shape_cast %19 : vector<1x20x16xf32> to vector<20x16xf32>
    %21 = vector.shape_cast %18 : vector<20x16xf32> to vector<1x20x16xf32>
    tpu.vector_store %arg7[%c1_17, %c0_18, %c0_19], %21 {strides = array<i32>} : memref<2x20x16xf32, #tpu.memory_space<vmem>>, vector<1x20x16xf32>,
    %c1_i32 = arith.constant 1 : i32
    %22 = arith.cmpi eq, %arg1, %c1_i32 : i32
    %23 = arith.extui %22 : i1 to i32
    %c0_i32_20 = arith.constant 0 : i32
    %24 = arith.cmpi ne, %23, %c0_i32_20 : i32
    scf.if %24 {
      %c0_21 = arith.constant 0 : index
      %c0_22 = arith.constant 0 : index
      %25 = vector.load %arg4[%c0_21, %c0_22] : memref<20x1xf32, #tpu.memory_space<vmem>>, vector<20x1xf32>
      %c0_23 = arith.constant 0 : index
      %c0_24 = arith.constant 0 : index
      %26 = vector.load %arg5[%c0_23, %c0_24] : memref<16x16xf32, #tpu.memory_space<vmem>>, vector<16x16xf32>
      %c0_25 = arith.constant 0 : index
      %c0_26 = arith.constant 0 : index
      %c0_27 = arith.constant 0 : index
      %27 = vector.load %arg7[%c0_25, %c0_26, %c0_27] : memref<2x20x16xf32, #tpu.memory_space<vmem>>, vector<1x20x16xf32>
      %28 = vector.shape_cast %27 : vector<1x20x16xf32> to vector<20x16xf32>
      %29 = vector.broadcast %25 : vector<20x1xf32> to vector<20x16xf32>
      %30 = arith.addf %28, %29 : vector<20x16xf32>
      %31 = arith.mulf %30, %30 : vector<20x16xf32>
      %cst_28 = arith.constant dense<0.000000e+00> : vector<20x16xf32>
      %32 = tpu.matmul %31, %26, %cst_28 {dimension_numbers = #tpu.dot_dimension_numbers<[1], [0], [0], [1], [0, 0, 1, 1], [], []>} : vector<20x16xf32>, vector<16x16xf32>, vector<20x16xf32> -> vector<20x16xf32>
      %cst_29 = arith.constant 1.000000e+00 : f32
      %33 = vector.broadcast %cst_29 : f32 to vector<20x16xf32>
      %34 = arith.addf %33, %32 : vector<20x16xf32>
      %35 = arith.divf %32, %34 : vector<20x16xf32>
      %36 = arith.mulf %35, %30 : vector<20x16xf32>
      %cst_30 = arith.constant 9.99999996E-13 : f32
      %37 = vector.broadcast %cst_30 : f32 to vector<20x16xf32>
      %38 = arith.addf %32, %37 : vector<20x16xf32>
      %39 = math.rsqrt %38 : vector<20x16xf32>
      %40 = arith.mulf %36, %39 : vector<20x16xf32>
      %c0_31 = arith.constant 0 : index
      %c0_32 = arith.constant 0 : index
      %c0_33 = arith.constant 0 : index
      %41 = vector.load %arg6[%c0_31, %c0_32, %c0_33] : memref<2x20x16xf32, #tpu.memory_space<vmem>>, vector<1x20x16xf32>
      %42 = vector.shape_cast %41 : vector<1x20x16xf32> to vector<20x16xf32>
      %43 = vector.shape_cast %40 : vector<20x16xf32> to vector<1x20x16xf32>
      tpu.vector_store %arg6[%c0_31, %c0_32, %c0_33], %43 {strides = array<i32>} : memref<2x20x16xf32, #tpu.memory_space<vmem>>, vector<1x20x16xf32>,
      %c1_34 = arith.constant 1 : index
      %c0_35 = arith.constant 0 : index
      %c0_36 = arith.constant 0 : index
      %44 = vector.load %arg7[%c1_34, %c0_35, %c0_36] : memref<2x20x16xf32, #tpu.memory_space<vmem>>, vector<1x20x16xf32>
      %45 = vector.shape_cast %44 : vector<1x20x16xf32> to vector<20x16xf32>
      %46 = vector.broadcast %25 : vector<20x1xf32> to vector<20x16xf32>
      %47 = arith.addf %45, %46 : vector<20x16xf32>
      %48 = arith.mulf %47, %47 : vector<20x16xf32>
      %cst_37 = arith.constant dense<0.000000e+00> : vector<20x16xf32>
      %49 = tpu.matmul %48, %26, %cst_37 {dimension_numbers = #tpu.dot_dimension_numbers<[1], [0], [0], [1], [0, 0, 1, 1], [], []>} : vector<20x16xf32>, vector<16x16xf32>, vector<20x16xf32> -> vector<20x16xf32>
      %cst_38 = arith.constant 1.000000e+00 : f32
      %50 = vector.broadcast %cst_38 : f32 to vector<20x16xf32>
      %51 = arith.addf %50, %49 : vector<20x16xf32>
      %52 = arith.divf %49, %51 : vector<20x16xf32>
      %53 = arith.mulf %52, %47 : vector<20x16xf32>
      %cst_39 = arith.constant 9.99999996E-13 : f32
      %54 = vector.broadcast %cst_39 : f32 to vector<20x16xf32>
      %55 = arith.addf %49, %54 : vector<20x16xf32>
      %56 = math.rsqrt %55 : vector<20x16xf32>
      %57 = arith.mulf %53, %56 : vector<20x16xf32>
      %c1_40 = arith.constant 1 : index
      %c0_41 = arith.constant 0 : index
      %c0_42 = arith.constant 0 : index
      %58 = vector.load %arg6[%c1_40, %c0_41, %c0_42] : memref<2x20x16xf32, #tpu.memory_space<vmem>>, vector<1x20x16xf32>
      %59 = vector.shape_cast %58 : vector<1x20x16xf32> to vector<20x16xf32>
      %60 = vector.shape_cast %57 : vector<20x16xf32> to vector<1x20x16xf32>
      tpu.vector_store %arg6[%c1_40, %c0_41, %c0_42], %60 {strides = array<i32>} : memref<2x20x16xf32, #tpu.memory_space<vmem>>, vector<1x20x16xf32>,
    } else {
    }
    return
  }
  func.func @transform_0(%arg0: i32, %arg1: i32) -> (i32, i32, i32) {
    %c0_i32 = arith.constant 0 : i32
    %c0_i32_0 = arith.constant 0 : i32
    return %arg0, %arg1, %c0_i32 : i32, i32, i32
  }
  func.func @transform_1(%arg0: i32, %arg1: i32) -> (i32, i32) {
    %c0_i32 = arith.constant 0 : i32
    %c0_i32_0 = arith.constant 0 : i32
    return %c0_i32, %arg1 : i32, i32
  }
  func.func @transform_2(%arg0: i32, %arg1: i32) -> (i32, i32) {
    %c0_i32 = arith.constant 0 : i32
    %c0_i32_0 = arith.constant 0 : i32
    %c0_i32_1 = arith.constant 0 : i32
    return %c0_i32, %c0_i32_0 : i32, i32
  }
  func.func @transform_3(%arg0: i32, %arg1: i32) -> (i32, i32) {
    %c0_i32 = arith.constant 0 : i32
    %c0_i32_0 = arith.constant 0 : i32
    %c0_i32_1 = arith.constant 0 : i32
    return %c0_i32, %c0_i32_0 : i32, i32
  }
  func.func @transform_4(%arg0: i32, %arg1: i32) -> (i32, i32, i32) {
    %c0_i32 = arith.constant 0 : i32
    %c0_i32_0 = arith.constant 0 : i32
    %c0_i32_1 = arith.constant 0 : i32
    return %arg0, %c0_i32, %c0_i32_0 : i32, i32, i32
  }
}

</mosaic_0001>

<llo_original>
// kernel: primary_caps_forward.1
$region0: #{primary_caps_forward.1}
  #allocation0 [shape = 'u32[]', space=smem, size = 0x4, offset = 0x4, fixed_abs, tag = 'smem constant byte address 0x4 - core index']
  #allocation1 [shape = 'u32[144,128]{1,0:T(1,128)}', space=vmem, size = 0x12000, scoped, tag = 'internal scratch']
  #allocation2 [shape = 'f32[2,20,16]{2,1,0:T(8,128)}', space=vmem, size = 0x6000, scoped, tag = 'scratch operand']
  %s0 = inlined_call_operand.vmem [shape: f32[2,256,16], index: 0, kind: input, shape index: {}]
  %s1 = inlined_call_operand.vmem [shape: f32[20,256], index: 1, kind: input, shape index: {}]
  %s2 = inlined_call_operand.vmem [shape: f32[20,1], index: 2, kind: input, shape index: {}]
  %s3 = inlined_call_operand.vmem [shape: f32[16,16], index: 3, kind: input, shape index: {}]
  %s4 = inlined_call_operand.vmem [shape: f32[2,20,16], index: 4, kind: output, shape index: {}]
  %s5 = sld [smem:[#allocation0]]
  $region133: #{primary_caps_forward.1} parent=0
    _
  %s7 = ssub.s32 1, %s5
  %s8 = scalar_select 0, %s7, %s5
  $region1: #{primary_caps_forward.1} parent=0
    #allocation3 [shape = 'u8[262144]{0}', space=vmem, size = 0x40000, scoped, tag = 'input window, operand 0']
    #allocation4 [shape = 'u8[24576]{0}', space=vmem, size = 0x6000, scoped, tag = 'input window, operand 1']
    loop: start=0, step=1, limit=4
    $region2: #{primary_caps_forward.1} parent=1 // loop_pre_header
      _
    $region3: #{primary_caps_forward.1} parent=1 // loop_header
      %s10 = sphi 0, %s14
      %p11 = scmp.ge.s32.totalorder %s10, 4
      %s17 = sphi 0, %s29
      %s18 = sphi 0, %s25
      %s19 = sphi 0, %s17
      %s20 = sphi 0, %s18
      %s21 = sphi 0, %s19
      %s22 = sphi 0, %s20
      %s34 = sphi 0, %s36
      %s37 = sphi 0, %s34
      %s38 = sphi 0, %s37
      %s54 = sphi 0, %s38
      %s60 = sphi 0, %s62
      %s63 = sphi 0, %s60
      %s64 = sphi 0, %s63
      %s80 = sphi 0, %s64
      %s84 = sphi 0, %s84
      %s86 = sphi 0, %s84
      %s87 = sphi 0, %s86
      %s101 = sphi 0, %s87
      %s105 = sphi 0, %s105
      %s107 = sphi 0, %s105
      %s108 = sphi 0, %s107
      %s122 = sphi 0, %s108
      %s128 = sphi 0, %s130
      %s131 = sphi 0, %s128
      %s132 = sphi 0, %s131
      %s148 = sphi 0, %s132
    $region4: #{primary_caps_forward.1} parent=1 // loop_header_branch
      %13 = sbr.rel (%p11) target = $region8
    $region5: #{primary_caps_forward.1} parent=1 // loop_body
      %s15 = ssub.s32 %s10, 1
      %s16 = ssub.s32 %s10, 2
      %s23 = sadd.s32 1, %s18
      %p24 = scmp.ge.s32.totalorder %s23, 2
      %s25 = scalar_select %p24, 0, %s23
      %s26 = sadd.s32 1, %s17
      %s27 = scalar_select %p24, %s26, %s17
      %p28 = scmp.ge.s32.totalorder %s27, 1
      %s29 = scalar_select %p28, 0, %s27
      %s30 = ssub.s32 %s17, %s29
      %s31 = ssub.s32 %s18, %s25
      %s32 = sor.u32 %s30, %s31
      %p33 = scmp.eq.s32.totalorder %s32, 0
      %s35 = sadd.s32 %s34, 1
      %s36 = scalar_select %p33, %s34, %s35
      %p39 = pneg %p33
      %p40 = scmp.eq.s32.totalorder %s10, 1
      %p41 = por %p39, %p40
      %p42 = scmp.ne.s32.totalorder %s34, %s37
      %p43 = scmp.eq.s32.totalorder %s10, 0
      %p44 = por %p42, %p43
      %p45 = scmp.ne.s32.totalorder %s34, %s37
      %p46 = scmp.eq.s32.totalorder %s15, 1
      %p47 = por %p45, %p46
      %p48 = scmp.ne.s32.totalorder %s37, %s38
      %p49 = scmp.eq.s32.totalorder %s15, 0
      %p50 = por %p48, %p49
      %p51 = scmp.ne.s32.totalorder %s37, %s38
      %p52 = scmp.eq.s32.totalorder %s16, 1
      %p53 = por %p51, %p52
      %p55 = scmp.ne.s32.totalorder %s38, %s54
      %p56 = scmp.eq.s32.totalorder %s16, 0
      %p57 = por %p55, %p56
      %s58 = ssub.s32 %s18, %s25
      %p59 = scmp.eq.s32.totalorder %s58, 0
      %s61 = sadd.s32 %s60, 1
      %s62 = scalar_select %p59, %s60, %s61
      %p65 = pneg %p59
      %p66 = scmp.eq.s32.totalorder %s10, 1
      %p67 = por %p65, %p66
      %p68 = scmp.ne.s32.totalorder %s60, %s63
      %p69 = scmp.eq.s32.totalorder %s10, 0
      %p70 = por %p68, %p69
      %p71 = scmp.ne.s32.totalorder %s60, %s63
      %p72 = scmp.eq.s32.totalorder %s15, 1
      %p73 = por %p71, %p72
      %p74 = scmp.ne.s32.totalorder %s63, %s64
      %p75 = scmp.eq.s32.totalorder %s15, 0
      %p76 = por %p74, %p75
      %p77 = scmp.ne.s32.totalorder %s63, %s64
      %p78 = scmp.eq.s32.totalorder %s16, 1
      %p79 = por %p77, %p78
      %p81 = scmp.ne.s32.totalorder %s64, %s80
      %p82 = scmp.eq.s32.totalorder %s16, 0
      %p83 = por %p81, %p82
      %s85 = sadd.s32 %s84, 1
      %p88 = scmp.eq.s32.totalorder %s10, 1
      %p89 = scmp.ne.s32.totalorder %s84, %s86
      %p90 = scmp.eq.s32.totalorder %s10, 0
      %p91 = por %p89, %p90
      %p92 = scmp.ne.s32.totalorder %s84, %s86
      %p93 = scmp.eq.s32.totalorder %s15, 1
      %p94 = por %p92, %p93
      %p95 = scmp.ne.s32.totalorder %s86, %s87
      %p96 = scmp.eq.s32.totalorder %s15, 0
      %p97 = por %p95, %p96
      %p98 = scmp.ne.s32.totalorder %s86, %s87
      %p99 = scmp.eq.s32.totalorder %s16, 1
      %p100 = por %p98, %p99
      %p102 = scmp.ne.s32.totalorder %s87, %s101
      %p103 = scmp.eq.s32.totalorder %s16, 0
      %p104 = por %p102, %p103
      %s106 = sadd.s32 %s105, 1
      %p109 = scmp.eq.s32.totalorder %s10, 1
      %p110 = scmp.ne.s32.totalorder %s105, %s107
      %p111 = scmp.eq.s32.totalorder %s10, 0
      %p112 = por %p110, %p111
      %p113 = scmp.ne.s32.totalorder %s105, %s107
      %p114 = scmp.eq.s32.totalorder %s15, 1
      %p115 = por %p113, %p114
      %p116 = scmp.ne.s32.totalorder %s107, %s108
      %p117 = scmp.eq.s32.totalorder %s15, 0
      %p118 = por %p116, %p117
      %p119 = scmp.ne.s32.totalorder %s107, %s108
      %p120 = scmp.eq.s32.totalorder %s16, 1
      %p121 = por %p119, %p120
      %p123 = scmp.ne.s32.totalorder %s108, %s122
      %p124 = scmp.eq.s32.totalorder %s16, 0
      %p125 = por %p123, %p124
      %s126 = ssub.s32 %s17, %s29
      %p127 = scmp.eq.s32.totalorder %s126, 0
      %s129 = sadd.s32 %s128, 1
      %s130 = scalar_select %p127, %s128, %s129
      %p133 = pneg %p127
      %p134 = scmp.eq.s32.totalorder %s10, 1
      %p135 = por %p133, %p134
      %p136 = scmp.ne.s32.totalorder %s128, %s131
      %p137 = scmp.eq.s32.totalorder %s10, 0
      %p138 = por %p136, %p137
      %p139 = scmp.ne.s32.totalorder %s128, %s131
      %p140 = scmp.eq.s32.totalorder %s15, 1
      %p141 = por %p139, %p140
      %p142 = scmp.ne.s32.totalorder %s131, %s132
      %p143 = scmp.eq.s32.totalorder %s15, 0
      %p144 = por %p142, %p143
      %p145 = scmp.ne.s32.totalorder %s131, %s132
      %p146 = scmp.eq.s32.totalorder %s16, 1
      %p147 = por %p145, %p146
      %p149 = scmp.ne.s32.totalorder %s132, %s148
      %p150 = scmp.eq.s32.totalorder %s16, 0
      %p151 = por %p149, %p150
      %p152 = scmp.le.s32.totalorder 1, %s10
      %p153 = scmp.lt.s32.totalorder %s10, 3
      %p154 = pnand %p152, %p153
      %p155 = pneg %p154
      // Predicated region
      $region9: #{primary_caps_forward.1} parent=5 // pred_check
        _
      $region10: #{primary_caps_forward.1} parent=5 // pred_check_branch
        %157 = sbr.rel (%p154) target = $region12
      $region11: #{primary_caps_forward.1} parent=5 // pred_region
        %s158 = ssub.s32 %s10, 1
        // Predicated region
        $region13: #{primary_caps_forward.1} parent=11 // pred_check
          %p159 = pneg %p97
        $region14: #{primary_caps_forward.1} parent=11 // pred_check_branch
          %161 = sbr.rel (%p159) target = $region16
        $region15: #{primary_caps_forward.1} parent=11 // pred_region
          _
        $region16: #{primary_caps_forward.1} parent=11 // pred_fallthru
          _
        // Predicated region
        $region17: #{primary_caps_forward.1} parent=11 // pred_check
          %p162 = pneg %p118
        $region18: #{primary_caps_forward.1} parent=11 // pred_check_branch
          %164 = sbr.rel (%p162) target = $region20
        $region19: #{primary_caps_forward.1} parent=11 // pred_region
          _
        $region20: #{primary_caps_forward.1} parent=11 // pred_fallthru
          _
      $region12: #{primary_caps_forward.1} parent=5 // pred_fallthru
        _
      %p165 = scmp.lt.s32.totalorder %s10, 2
      // Predicated region
      $region21: #{primary_caps_forward.1} parent=5 // pred_check
        %p166 = pneg %p165
      $region22: #{primary_caps_forward.1} parent=5 // pred_check_branch
        %168 = sbr.rel (%p166) target = $region24
      $region23: #{primary_caps_forward.1} parent=5 // pred_region
        // Predicated region
        $region25: #{primary_caps_forward.1} parent=23 // pred_check
          %p169 = pneg %p44
        $region26: #{primary_caps_forward.1} parent=23 // pred_check_branch
          %171 = sbr.rel (%p169) target = $region28
        $region27: #{primary_caps_forward.1} parent=23 // pred_region
          %s172 = sand.u32 %s34, 1
          %s173 = sand.u32 %s34, 1
          %s174 = smul.addr %s173, 256
          %s175 = scalar_lea.vmem [#allocation3], %s174
          %s176 = smul.u32 2, %s17
          %s177 = smul.u32 16, %s18
          %s178 = smul.addr %s176, 32
          %s179 = sadd.s32 %s177, %s178
          %s180 = smul.addr %s179, 8
          %s181 = scalar_lea.vmem %s0, %s180
          // Predicated region
          $region29: #{primary_caps_forward.1} parent=27 // pred_check
            _
          $region30: #{primary_caps_forward.1} parent=27 // pred_check_branch
            %183 = sbr.rel (0) target = $region32
          $region31: #{primary_caps_forward.1} parent=27 // pred_region
            // Predicated region
            $region33: #{primary_caps_forward.1} parent=31 // pred_check
              _
            $region34: #{primary_caps_forward.1} parent=31 // pred_check_branch
              %185 = sbr.rel (0) target = $region36
            $region35: #{primary_caps_forward.1} parent=31 // pred_region
              // Predicated region
              $region48: #{primary_caps_forward.1} parent=35 // pred_check
                _
              $region49: #{primary_caps_forward.1} parent=35 // pred_check_branch
                %262 = sbr.rel (0) target = $region51
              $region50: #{primary_caps_forward.1} parent=35 // pred_region
                loop: start=0, step=1, limit=1
                $region52: #{primary_caps_forward.1} parent=50 // loop_pre_header
                  _
                $region53: #{primary_caps_forward.1} parent=50 // loop_header
                  %s264 = sphi 0, %s268
                  %p265 = scmp.ge.s32.totalorder %s264, 1
                  %s269 = sphi %s181, %s181
                  %s270 = sphi %s175, %s175
                $region54: #{primary_caps_forward.1} parent=50 // loop_header_branch
                  %267 = sbr.rel (%p265) target = $region58
                $region55: #{primary_caps_forward.1} parent=50 // loop_body
                  %v271 = vld [vmem:[%s269] sm:$0xff]
                  %272 = vst [vmem:[%s270] sm:$0xff] %v271
                  %v273 = vld [vmem:[%s269 + $0x8] sm:$0xff]
                  %274 = vst [vmem:[%s270 + $0x8] sm:$0xff] %v273
                  %v275 = vld [vmem:[%s269 + $0x10] sm:$0xff]
                  %276 = vst [vmem:[%s270 + $0x10] sm:$0xff] %v275
                  %v277 = vld [vmem:[%s269 + $0x18] sm:$0xff]
                  %278 = vst [vmem:[%s270 + $0x18] sm:$0xff] %v277
                  %v279 = vld [vmem:[%s269 + $0x20] sm:$0xff]
                  %280 = vst [vmem:[%s270 + $0x20] sm:$0xff] %v279
                  %v281 = vld [vmem:[%s269 + $0x28] sm:$0xff]
                  %282 = vst [vmem:[%s270 + $0x28] sm:$0xff] %v281
                  %v283 = vld [vmem:[%s269 + $0x30] sm:$0xff]
                  %284 = vst [vmem:[%s270 + $0x30] sm:$0xff] %v283
                  %v285 = vld [vmem:[%s269 + $0x38] sm:$0xff]
                  %286 = vst [vmem:[%s270 + $0x38] sm:$0xff] %v285
                  %v287 = vld [vmem:[%s269 + $0x40] sm:$0xff]
                  %288 = vst [vmem:[%s270 + $0x40] sm:$0xff] %v287
                  %v289 = vld [vmem:[%s269 + $0x48] sm:$0xff]
                  %290 = vst [vmem:[%s270 + $0x48] sm:$0xff] %v289
                  %v291 = vld [vmem:[%s269 + $0x50] sm:$0xff]
                  %292 = vst [vmem:[%s270 + $0x50] sm:$0xff] %v291
                  %v293 = vld [vmem:[%s269 + $0x58] sm:$0xff]
                  %294 = vst [vmem:[%s270 + $0x58] sm:$0xff] %v293
                  %v295 = vld [vmem:[%s269 + $0x60] sm:$0xff]
                  %296 = vst [vmem:[%s270 + $0x60] sm:$0xff] %v295
                  %v297 = vld [vmem:[%s269 + $0x68] sm:$0xff]
                  %298 = vst [vmem:[%s270 + $0x68] sm:$0xff] %v297
                  %v299 = vld [vmem:[%s269 + $0x70] sm:$0xff]
                  %300 = vst [vmem:[%s270 + $0x70] sm:$0xff] %v299
                  %v301 = vld [vmem:[%s269 + $0x78] sm:$0xff]
                  %302 = vst [vmem:[%s270 + $0x78] sm:$0xff] %v301
                  %v303 = vld [vmem:[%s269 + $0x100] sm:$0xff]
                  %304 = vst [vmem:[%s270 + $0x80] sm:$0xff] %v303
                  %v305 = vld [vmem:[%s269 + $0x108] sm:$0xff]
                  %306 = vst [vmem:[%s270 + $0x88] sm:$0xff] %v305
                  %v307 = vld [vmem:[%s269 + $0x110] sm:$0xff]
                  %308 = vst [vmem:[%s270 + $0x90] sm:$0xff] %v307
                  %v309 = vld [vmem:[%s269 + $0x118] sm:$0xff]
                  %310 = vst [vmem:[%s270 + $0x98] sm:$0xff] %v309
                  %v311 = vld [vmem:[%s269 + $0x120] sm:$0xff]
                  %312 = vst [vmem:[%s270 + $0xa0] sm:$0xff] %v311
                  %v313 = vld [vmem:[%s269 + $0x128] sm:$0xff]
                  %314 = vst [vmem:[%s270 + $0xa8] sm:$0xff] %v313
                  %v315 = vld [vmem:[%s269 + $0x130] sm:$0xff]
                  %316 = vst [vmem:[%s270 + $0xb0] sm:$0xff] %v315
                  %v317 = vld [vmem:[%s269 + $0x138] sm:$0xff]
                  %318 = vst [vmem:[%s270 + $0xb8] sm:$0xff] %v317
                  %v319 = vld [vmem:[%s269 + $0x140] sm:$0xff]
                  %320 = vst [vmem:[%s270 + $0xc0] sm:$0xff] %v319
                  %v321 = vld [vmem:[%s269 + $0x148] sm:$0xff]
                  %322 = vst [vmem:[%s270 + $0xc8] sm:$0xff] %v321
                  %v323 = vld [vmem:[%s269 + $0x150] sm:$0xff]
                  %324 = vst [vmem:[%s270 + $0xd0] sm:$0xff] %v323
                  %v325 = vld [vmem:[%s269 + $0x158] sm:$0xff]
                  %326 = vst [vmem:[%s270 + $0xd8] sm:$0xff] %v325
                  %v327 = vld [vmem:[%s269 + $0x160] sm:$0xff]
                  %328 = vst [vmem:[%s270 + $0xe0] sm:$0xff] %v327
                  %v329 = vld [vmem:[%s269 + $0x168] sm:$0xff]
                  %330 = vst [vmem:[%s270 + $0xe8] sm:$0xff] %v329
                  %v331 = vld [vmem:[%s269 + $0x170] sm:$0xff]
                  %332 = vst [vmem:[%s270 + $0xf0] sm:$0xff] %v331
                  %v333 = vld [vmem:[%s269 + $0x178] sm:$0xff]
                  %334 = vst [vmem:[%s270 + $0xf8] sm:$0xff] %v333
                $region56: #{primary_caps_forward.1} parent=50 // loop_footer
                  %s268 = sadd.s32 1, %s264
                $region57: #{primary_caps_forward.1} parent=50 // loop_footer_branch
                  %263 = sbr.rel target = $region53
                $region58: #{primary_caps_forward.1} parent=50 // loop_exit
                  _
              $region51: #{primary_caps_forward.1} parent=35 // pred_fallthru
                _
              // Predicated region
              $region59: #{primary_caps_forward.1} parent=35 // pred_check
                _
              $region60: #{primary_caps_forward.1} parent=35 // pred_check_branch
                %336 = sbr.rel target = $region62
              $region61: #{primary_caps_forward.1} parent=35 // pred_region
                _
              $region62: #{primary_caps_forward.1} parent=35 // pred_fallthru
                _
            $region36: #{primary_caps_forward.1} parent=31 // pred_fallthru
              _
            // Predicated region
            $region37: #{primary_caps_forward.1} parent=31 // pred_check
              _
            $region38: #{primary_caps_forward.1} parent=31 // pred_check_branch
              %187 = sbr.rel target = $region40
            $region39: #{primary_caps_forward.1} parent=31 // pred_region
              loop: start=0, step=1, limit=1
              $region41: #{primary_caps_forward.1} parent=39 // loop_pre_header
                _
              $region42: #{primary_caps_forward.1} parent=39 // loop_header
                %s190 = sphi 0, %s194
                %p191 = scmp.ge.s32.totalorder %s190, 1
                %s195 = sphi %s181, %s181
                %s196 = sphi %s175, %s175
              $region43: #{primary_caps_forward.1} parent=39 // loop_header_branch
                %193 = sbr.rel (%p191) target = $region47
              $region44: #{primary_caps_forward.1} parent=39 // loop_body
                %v197 = vld [vmem:[%s195] sm:$0xff]
                %198 = vst [vmem:[%s196] sm:$0xff] %v197
                %v199 = vld [vmem:[%s195 + $0x8] sm:$0xff]
                %200 = vst [vmem:[%s196 + $0x8] sm:$0xff] %v199
                %v201 = vld [vmem:[%s195 + $0x10] sm:$0xff]
                %202 = vst [vmem:[%s196 + $0x10] sm:$0xff] %v201
                %v203 = vld [vmem:[%s195 + $0x18] sm:$0xff]
                %204 = vst [vmem:[%s196 + $0x18] sm:$0xff] %v203
                %v205 = vld [vmem:[%s195 + $0x20] sm:$0xff]
                %206 = vst [vmem:[%s196 + $0x20] sm:$0xff] %v205
                %v207 = vld [vmem:[%s195 + $0x28] sm:$0xff]
                %208 = vst [vmem:[%s196 + $0x28] sm:$0xff] %v207
                %v209 = vld [vmem:[%s195 + $0x30] sm:$0xff]
                %210 = vst [vmem:[%s196 + $0x30] sm:$0xff] %v209
                %v211 = vld [vmem:[%s195 + $0x38] sm:$0xff]
                %212 = vst [vmem:[%s196 + $0x38] sm:$0xff] %v211
                %v213 = vld [vmem:[%s195 + $0x40] sm:$0xff]
                %214 = vst [vmem:[%s196 + $0x40] sm:$0xff] %v213
                %v215 = vld [vmem:[%s195 + $0x48] sm:$0xff]
                %216 = vst [vmem:[%s196 + $0x48] sm:$0xff] %v215
                %v217 = vld [vmem:[%s195 + $0x50] sm:$0xff]
                %218 = vst [vmem:[%s196 + $0x50] sm:$0xff] %v217
                %v219 = vld [vmem:[%s195 + $0x58] sm:$0xff]
                %220 = vst [vmem:[%s196 + $0x58] sm:$0xff] %v219
                %v221 = vld [vmem:[%s195 + $0x60] sm:$0xff]
                %222 = vst [vmem:[%s196 + $0x60] sm:$0xff] %v221
                %v223 = vld [vmem:[%s195 + $0x68] sm:$0xff]
                %224 = vst [vmem:[%s196 + $0x68] sm:$0xff] %v223
                %v225 = vld [vmem:[%s195 + $0x70] sm:$0xff]
                %226 = vst [vmem:[%s196 + $0x70] sm:$0xff] %v225
                %v227 = vld [vmem:[%s195 + $0x78] sm:$0xff]
                %228 = vst [vmem:[%s196 + $0x78] sm:$0xff] %v227
                %v229 = vld [vmem:[%s195 + $0x100] sm:$0xff]
                %230 = vst [vmem:[%s196 + $0x80] sm:$0xff] %v229
                %v231 = vld [vmem:[%s195 + $0x108] sm:$0xff]
                %232 = vst [vmem:[%s196 + $0x88] sm:$0xff] %v231
                %v233 = vld [vmem:[%s195 + $0x110] sm:$0xff]
                %234 = vst [vmem:[%s196 + $0x90] sm:$0xff] %v233
                %v235 = vld [vmem:[%s195 + $0x118] sm:$0xff]
                %236 = vst [vmem:[%s196 + $0x98] sm:$0xff] %v235
                %v237 = vld [vmem:[%s195 + $0x120] sm:$0xff]
                %238 = vst [vmem:[%s196 + $0xa0] sm:$0xff] %v237
                %v239 = vld [vmem:[%s195 + $0x128] sm:$0xff]
                %240 = vst [vmem:[%s196 + $0xa8] sm:$0xff] %v239
                %v241 = vld [vmem:[%s195 + $0x130] sm:$0xff]
                %242 = vst [vmem:[%s196 + $0xb0] sm:$0xff] %v241
                %v243 = vld [vmem:[%s195 + $0x138] sm:$0xff]
                %244 = vst [vmem:[%s196 + $0xb8] sm:$0xff] %v243
                %v245 = vld [vmem:[%s195 + $0x140] sm:$0xff]
                %246 = vst [vmem:[%s196 + $0xc0] sm:$0xff] %v245
                %v247 = vld [vmem:[%s195 + $0x148] sm:$0xff]
                %248 = vst [vmem:[%s196 + $0xc8] sm:$0xff] %v247
                %v249 = vld [vmem:[%s195 + $0x150] sm:$0xff]
                %250 = vst [vmem:[%s196 + $0xd0] sm:$0xff] %v249
                %v251 = vld [vmem:[%s195 + $0x158] sm:$0xff]
                %252 = vst [vmem:[%s196 + $0xd8] sm:$0xff] %v251
                %v253 = vld [vmem:[%s195 + $0x160] sm:$0xff]
                %254 = vst [vmem:[%s196 + $0xe0] sm:$0xff] %v253
                %v255 = vld [vmem:[%s195 + $0x168] sm:$0xff]
                %256 = vst [vmem:[%s196 + $0xe8] sm:$0xff] %v255
                %v257 = vld [vmem:[%s195 + $0x170] sm:$0xff]
                %258 = vst [vmem:[%s196 + $0xf0] sm:$0xff] %v257
                %v259 = vld [vmem:[%s195 + $0x178] sm:$0xff]
                %260 = vst [vmem:[%s196 + $0xf8] sm:$0xff] %v259
              $region45: #{primary_caps_forward.1} parent=39 // loop_footer
                %s194 = sadd.s32 1, %s190
              $region46: #{primary_caps_forward.1} parent=39 // loop_footer_branch
                %189 = sbr.rel target = $region42
              $region47: #{primary_caps_forward.1} parent=39 // loop_exit
                _
            $region40: #{primary_caps_forward.1} parent=31 // pred_fallthru
              _
          $region32: #{primary_caps_forward.1} parent=27 // pred_fallthru
            _
          %337 = vnop
        $region28: #{primary_caps_forward.1} parent=23 // pred_fallthru
          _
        // Predicated region
        $region63: #{primary_caps_forward.1} parent=23 // pred_check
          %p338 = pneg %p70
        $region64: #{primary_caps_forward.1} parent=23 // pred_check_branch
          %340 = sbr.rel (%p338) target = $region66
        $region65: #{primary_caps_forward.1} parent=23 // pred_region
          %s341 = sand.u32 %s60, 1
          %s342 = sand.u32 %s60, 1
          %s343 = smul.addr %s342, 24
          %s344 = scalar_lea.vmem [#allocation4], %s343
          %s345 = smul.addr %s18, 8
          %s346 = scalar_lea.vmem %s1, %s345
          // Predicated region
          $region67: #{primary_caps_forward.1} parent=65 // pred_check
            _
          $region68: #{primary_caps_forward.1} parent=65 // pred_check_branch
            %348 = sbr.rel (0) target = $region70
          $region69: #{primary_caps_forward.1} parent=65 // pred_region
            // Predicated region
            $region71: #{primary_caps_forward.1} parent=69 // pred_check
              _
            $region72: #{primary_caps_forward.1} parent=69 // pred_check_branch
              %350 = sbr.rel (0) target = $region74
            $region73: #{primary_caps_forward.1} parent=69 // pred_region
              // Predicated region
              $region86: #{primary_caps_forward.1} parent=73 // pred_check
                _
              $region87: #{primary_caps_forward.1} parent=73 // pred_check_branch
                %369 = sbr.rel (0) target = $region89
              $region88: #{primary_caps_forward.1} parent=73 // pred_region
                loop: start=0, step=1, limit=1
                $region90: #{primary_caps_forward.1} parent=88 // loop_pre_header
                  _
                $region91: #{primary_caps_forward.1} parent=88 // loop_header
                  %s371 = sphi 0, %s375
                  %p372 = scmp.ge.s32.totalorder %s371, 1
                  %s376 = sphi %s346, %s346
                  %s377 = sphi %s344, %s344
                $region92: #{primary_caps_forward.1} parent=88 // loop_header_branch
                  %374 = sbr.rel (%p372) target = $region96
                $region93: #{primary_caps_forward.1} parent=88 // loop_body
                  %v378 = vld [vmem:[%s376] sm:$0xff]
                  %379 = vst [vmem:[%s377] sm:$0xff] %v378
                  %v380 = vld [vmem:[%s376 + $0x10] sm:$0xff]
                  %381 = vst [vmem:[%s377 + $0x8] sm:$0xff] %v380
                  %v382 = vld [vmem:[%s376 + $0x20] sm:$0xff]
                  %383 = vst [vmem:[%s377 + $0x10] sm:$0xff] %v382
                $region94: #{primary_caps_forward.1} parent=88 // loop_footer
                  %s375 = sadd.s32 1, %s371
                $region95: #{primary_caps_forward.1} parent=88 // loop_footer_branch
                  %370 = sbr.rel target = $region91
                $region96: #{primary_caps_forward.1} parent=88 // loop_exit
                  _
              $region89: #{primary_caps_forward.1} parent=73 // pred_fallthru
                _
              // Predicated region
              $region97: #{primary_caps_forward.1} parent=73 // pred_check
                _
              $region98: #{primary_caps_forward.1} parent=73 // pred_check_branch
                %385 = sbr.rel target = $region100
              $region99: #{primary_caps_forward.1} parent=73 // pred_region
                _
              $region100: #{primary_caps_forward.1} parent=73 // pred_fallthru
                _
            $region74: #{primary_caps_forward.1} parent=69 // pred_fallthru
              _
            // Predicated region
            $region75: #{primary_caps_forward.1} parent=69 // pred_check
              _
            $region76: #{primary_caps_forward.1} parent=69 // pred_check_branch
              %352 = sbr.rel target = $region78
            $region77: #{primary_caps_forward.1} parent=69 // pred_region
              loop: start=0, step=1, limit=1
              $region79: #{primary_caps_forward.1} parent=77 // loop_pre_header
                _
              $region80: #{primary_caps_forward.1} parent=77 // loop_header
                %s355 = sphi 0, %s359
                %p356 = scmp.ge.s32.totalorder %s355, 1
                %s360 = sphi %s346, %s346
                %s361 = sphi %s344, %s344
              $region81: #{primary_caps_forward.1} parent=77 // loop_header_branch
                %358 = sbr.rel (%p356) target = $region85
              $region82: #{primary_caps_forward.1} parent=77 // loop_body
                %v362 = vld [vmem:[%s360] sm:$0xff]
                %363 = vst [vmem:[%s361] sm:$0xff] %v362
                %v364 = vld [vmem:[%s360 + $0x10] sm:$0xff]
                %365 = vst [vmem:[%s361 + $0x8] sm:$0xff] %v364
                %v366 = vld [vmem:[%s360 + $0x20] sm:$0xff]
                %367 = vst [vmem:[%s361 + $0x10] sm:$0xff] %v366
              $region83: #{primary_caps_forward.1} parent=77 // loop_footer
                %s359 = sadd.s32 1, %s355
              $region84: #{primary_caps_forward.1} parent=77 // loop_footer_branch
                %354 = sbr.rel target = $region80
              $region85: #{primary_caps_forward.1} parent=77 // loop_exit
                _
            $region78: #{primary_caps_forward.1} parent=69 // pred_fallthru
              _
          $region70: #{primary_caps_forward.1} parent=65 // pred_fallthru
            _
          %386 = vnop
        $region66: #{primary_caps_forward.1} parent=23 // pred_fallthru
          _
      $region24: #{primary_caps_forward.1} parent=5 // pred_fallthru
        _
      %p387 = scmp.le.s32.totalorder 1, %s10
      %p388 = scmp.lt.s32.totalorder %s10, 3
      %p389 = pnand %p387, %p388
      %p390 = pneg %p389
      // Predicated region
      $region101: #{primary_caps_forward.1} parent=5 // pred_check
        _
      $region102: #{primary_caps_forward.1} parent=5 // pred_check_branch
        %392 = sbr.rel (%p389) target = $region104
      $region103: #{primary_caps_forward.1} parent=5 // pred_region
        %s393 = ssub.s32 %s10, 1
        %s394 = sand.u32 %s37, 1
        %s395 = sand.u32 %s37, 1
        %s396 = smul.addr %s395, 256
        %s397 = scalar_lea.vmem [#allocation3], %s396
        // Predicated region
        $region105: #{primary_caps_forward.1} parent=103 // pred_check
          %p398 = pneg %p50
        $region106: #{primary_caps_forward.1} parent=103 // pred_check_branch
          %400 = sbr.rel (%p398) target = $region108
        $region107: #{primary_caps_forward.1} parent=103 // pred_region
          _
        $region108: #{primary_caps_forward.1} parent=103 // pred_fallthru
          _
        %s401 = sand.u32 %s63, 1
        %s402 = sand.u32 %s63, 1
        %s403 = smul.addr %s402, 24
        %s404 = scalar_lea.vmem [#allocation4], %s403
        // Predicated region
        $region109: #{primary_caps_forward.1} parent=103 // pred_check
          %p405 = pneg %p76
        $region110: #{primary_caps_forward.1} parent=103 // pred_check_branch
          %407 = sbr.rel (%p405) target = $region112
        $region111: #{primary_caps_forward.1} parent=103 // pred_region
          _
        $region112: #{primary_caps_forward.1} parent=103 // pred_fallthru
          _
        %s408 = sand.u32 %s37, 1
        %s409 = sand.u32 %s37, 1
        %s410 = smul.addr %s409, 256
        %s411 = scalar_lea.vmem [#allocation3], %s410
        %p412 = pneg %p50
        %p413 = pneg %p47
        %s414 = sand.u32 %s63, 1
        %s415 = sand.u32 %s63, 1
        %s416 = smul.addr %s415, 24
        %s417 = scalar_lea.vmem [#allocation4], %s416
        %p418 = pneg %p76
        %p419 = pneg %p73
        %p420 = pneg %p97
        %p421 = pneg %p94
        %p422 = pneg %p118
        %p423 = pneg %p115
        %p424 = pneg %p144
        %p425 = pneg %p141
        %s426 = smul.u32 2, %s19
        %p427 = scmp.lt.s32.totalorder %s426, 1
        %s428 = scalar_select %p427, %s426, 1
        %s429 = smul.addr %s428, 3
        %s430 = smul.addr %s429, 8
        %s431 = scalar_lea.vmem %s4, %s430
        %s432 = smul.u32 2, %s19
        %s433 = smul.u32 16, %s20
        %s434 = smul.u32 2, %s19
        %p435 = scmp.lt.s32.totalorder %s434, 1
        %s436 = scalar_select %p435, %s434, 1
        %s437 = smul.addr %s436, 3
        %s438 = smul.addr %s437, 8
        %s439 = scalar_lea.vmem %s4, %s438
        %s440 = smul.u32 2, %s19
        %p441 = scmp.eq.s32.totalorder %s20, 0
        // Predicated region
        $region113: #{primary_caps_forward.1} parent=103 // pred_check
          %p442 = pneg %p441
        $region114: #{primary_caps_forward.1} parent=103 // pred_check_branch
          %444 = sbr.rel (%p442) target = $region116
        $region115: #{primary_caps_forward.1} parent=103 // pred_region
          %vm445 = vcmask 130048
          %446 = vst.msk [vmem:[#allocation2] sm:$0xff] %vm445, 0.0
          %447 = vst.msk [vmem:[#allocation2 + $0x8] sm:$0xff] %vm445, 0.0
          %vm448 = vcmask 125952
          %449 = vst.msk [vmem:[#allocation2 + $0x10] sm:$0xf] %vm448, 0.0
          %450 = vst.msk [vmem:[#allocation2 + $0x18] sm:$0xff] %vm445, 0.0
          %451 = vst.msk [vmem:[#allocation2 + $0x20] sm:$0xff] %vm445, 0.0
          %452 = vst.msk [vmem:[#allocation2 + $0x28] sm:$0xf] %vm448, 0.0
        $region116: #{primary_caps_forward.1} parent=103 // pred_fallthru
          _
        %v453 = vld [vmem:[%s404] sm:$0xff]
        %v454 = vld [vmem:[%s404 + $0x8] sm:$0xff]
        %v455 = vld [vmem:[%s404 + $0x10] sm:$0xf]
        %v456 = vld [vmem:[#allocation2] sm:$0xff]
        %v457 = vld [vmem:[#allocation2 + $0x8] sm:$0xff]
        %v458 = vld [vmem:[#allocation2 + $0x10] sm:$0xf]
        %v459 = vld [vmem:[%s397] sm:$0xff]
        %v460 = vld [vmem:[%s397 + $0x8] sm:$0xff]
        %v461 = vld [vmem:[%s397 + $0x10] sm:$0xff]
        %v462 = vld [vmem:[%s397 + $0x18] sm:$0xff]
        %v463 = vld [vmem:[%s397 + $0x20] sm:$0xff]
        %v464 = vld [vmem:[%s397 + $0x28] sm:$0xff]
        %v465 = vld [vmem:[%s397 + $0x30] sm:$0xff]
        %v466 = vld [vmem:[%s397 + $0x38] sm:$0xff]
        %v467 = vld [vmem:[%s397 + $0x40] sm:$0xff]
        %v468 = vld [vmem:[%s397 + $0x48] sm:$0xff]
        %v469 = vld [vmem:[%s397 + $0x50] sm:$0xff]
        %v470 = vld [vmem:[%s397 + $0x58] sm:$0xff]
        %v471 = vld [vmem:[%s397 + $0x60] sm:$0xff]
        %v472 = vld [vmem:[%s397 + $0x68] sm:$0xff]
        %v473 = vld [vmem:[%s397 + $0x70] sm:$0xff]
        %v474 = vld [vmem:[%s397 + $0x78] sm:$0xff]
        %475 = vmatprep.subr.mxu0 0.0
        %476 = vmatpush1.msra.mxu0 %v459
        %477 = vmatprep.subr.mxu0 0.0
        %478 = vmatpush1.msra.mxu0 %v460
        %479 = vmatprep.subr.mxu0 0.0
        %480 = vmatpush1.msra.mxu0 %v461
        %481 = vmatprep.subr.mxu0 0.0
        %482 = vmatpush1.msra.mxu0 %v462
        %483 = vmatprep.subr.mxu0 0.0
        %484 = vmatpush1.msra.mxu0 %v463
        %485 = vmatprep.subr.mxu0 0.0
        %486 = vmatpush1.msra.mxu0 %v464
        %487 = vmatprep.subr.mxu0 0.0
        %488 = vmatpush1.msra.mxu0 %v465
        %489 = vmatprep.subr.mxu0 0.0
        %490 = vmatpush1.msra.mxu0 %v466
        %491 = vmatprep.subr.mxu0 0.0
        %492 = vmatpush1.msra.mxu0 %v467
        %493 = vmatprep.subr.mxu0 0.0
        %494 = vmatpush1.msra.mxu0 %v468
        %495 = vmatprep.subr.mxu0 0.0
        %496 = vmatpush1.msra.mxu0 %v469
        %497 = vmatprep.subr.mxu0 0.0
        %498 = vmatpush1.msra.mxu0 %v470
        %499 = vmatprep.subr.mxu0 0.0
        %500 = vmatpush1.msra.mxu0 %v471
        %501 = vmatprep.subr.mxu0 0.0
        %502 = vmatpush1.msra.mxu0 %v472
        %503 = vmatprep.subr.mxu0 0.0
        %504 = vmatpush1.msra.mxu0 %v473
        %505 = vmatprep.subr.mxu0 0.0
        %506 = vmatpush1.msra.mxu0 %v474
        %507 = vmatprep.subr.mxu0 0.0
        %508 = vmatpush1.msra.mxu0 0.0
        %509 = vmatprep.subr.mxu0 0.0
        %510 = vmatpush1.msra.mxu0 0.0
        %511 = vmatprep.subr.mxu0 0.0
        %512 = vmatpush1.msra.mxu0 0.0
        %513 = vmatprep.subr.mxu0 0.0
        %514 = vmatpush1.msra.mxu0 0.0
        %515 = vmatprep.subr.mxu0 0.0
        %516 = vmatpush1.msra.mxu0 0.0
        %517 = vmatprep.subr.mxu0 0.0
        %518 = vmatpush1.msra.mxu0 0.0
        %519 = vmatprep.subr.mxu0 0.0
        %520 = vmatpush1.msra.mxu0 0.0
        %521 = vmatprep.subr.mxu0 0.0
        %522 = vmatpush1.msra.mxu0 0.0
        %523 = vmatprep.subr.mxu0 0.0
        %524 = vmatpush1.msra.mxu0 0.0
        %525 = vmatprep.subr.mxu0 0.0
        %526 = vmatpush1.msra.mxu0 0.0
        %527 = vmatprep.subr.mxu0 0.0
        %528 = vmatpush1.msra.mxu0 0.0
        %529 = vmatprep.subr.mxu0 0.0
        %530 = vmatpush1.msra.mxu0 0.0
        %531 = vmatprep.subr.mxu0 0.0
        %532 = vmatpush1.msra.mxu0 0.0
        %533 = vmatprep.subr.mxu0 0.0
        %534 = vmatpush1.msra.mxu0 0.0
        %535 = vmatprep.subr.mxu0 0.0
        %536 = vmatpush1.msra.mxu0 0.0
        %537 = vmatprep.subr.mxu0 0.0
        %538 = vmatpush1.msra.mxu0 0.0
        %539 = vmatprep.mubr.f32.mxu0 0.0
        %540 = vmatmul.mubr.f32.gmra.mrb[0].mxu0 %v453
        %v541 = vpop.f32.mrb[0].mxu0
        %v542 = vadd.f32 0.0, %v541
        %v543 = vpop.f32.mrb[0].mxu0
        %544 = vmatprep.mubr.f32.mxu0 0.0
        %545 = vmatmul.mubr.f32.gmra.mrb[0].mxu0 %v454
        %v546 = vpop.f32.mrb[0].mxu0
        %v547 = vadd.f32 0.0, %v546
        %v548 = vpop.f32.mrb[0].mxu0
        %549 = vmatprep.mubr.f32.mxu0 0.0
        %550 = vmatmul.mubr.f32.gmra.mrb[0].mxu0 %v455
        %v551 = vpop.f32.mrb[0].mxu0
        %v552 = vadd.f32 0.0, %v551
        %v553 = vpop.f32.mrb[0].mxu0
        %554 = vdwg.mxu0
        %v555 = vadd.f32 %v456, %v542
        %v556 = vadd.f32 %v457, %v547
        %v557 = vadd.f32 %v458, %v552
        %vm558 = vcmask 130048
        %559 = vst.msk [vmem:[#allocation2] sm:$0xff] %vm558, %v555
        %560 = vst.msk [vmem:[#allocation2 + $0x8] sm:$0xff] %vm558, %v556
        %vm561 = vcmask 125952
        %562 = vst.msk [vmem:[#allocation2 + $0x10] sm:$0xf] %vm561, %v557
        %s563 = scalar_lea.vmem [#allocation2], 24
        %v564 = vld [vmem:[%s563] sm:$0xff]
        %v565 = vld [vmem:[%s563 + $0x8] sm:$0xff]
        %v566 = vld [vmem:[%s563 + $0x10] sm:$0xf]
        %s567 = scalar_lea.vmem %s397, 128 [#allocation3]
        %v568 = vld [vmem:[%s567] sm:$0xff]
        %v569 = vld [vmem:[%s567 + $0x8] sm:$0xff]
        %v570 = vld [vmem:[%s567 + $0x10] sm:$0xff]
        %v571 = vld [vmem:[%s567 + $0x18] sm:$0xff]
        %v572 = vld [vmem:[%s567 + $0x20] sm:$0xff]
        %v573 = vld [vmem:[%s567 + $0x28] sm:$0xff]
        %v574 = vld [vmem:[%s567 + $0x30] sm:$0xff]
        %v575 = vld [vmem:[%s567 + $0x38] sm:$0xff]
        %v576 = vld [vmem:[%s567 + $0x40] sm:$0xff]
        %v577 = vld [vmem:[%s567 + $0x48] sm:$0xff]
        %v578 = vld [vmem:[%s567 + $0x50] sm:$0xff]
        %v579 = vld [vmem:[%s567 + $0x58] sm:$0xff]
        %v580 = vld [vmem:[%s567 + $0x60] sm:$0xff]
        %v581 = vld [vmem:[%s567 + $0x68] sm:$0xff]
        %v582 = vld [vmem:[%s567 + $0x70] sm:$0xff]
        %v583 = vld [vmem:[%s567 + $0x78] sm:$0xff]
        %584 = vmatprep.subr.mxu0 0.0
        %585 = vmatpush1.msra.mxu0 %v568
        %586 = vmatprep.subr.mxu0 0.0
        %587 = vmatpush1.msra.mxu0 %v569
        %588 = vmatprep.subr.mxu0 0.0
        %589 = vmatpush1.msra.mxu0 %v570
        %590 = vmatprep.subr.mxu0 0.0
        %591 = vmatpush1.msra.mxu0 %v571
        %592 = vmatprep.subr.mxu0 0.0
        %593 = vmatpush1.msra.mxu0 %v572
        %594 = vmatprep.subr.mxu0 0.0
        %595 = vmatpush1.msra.mxu0 %v573
        %596 = vmatprep.subr.mxu0 0.0
        %597 = vmatpush1.msra.mxu0 %v574
        %598 = vmatprep.subr.mxu0 0.0
        %599 = vmatpush1.msra.mxu0 %v575
        %600 = vmatprep.subr.mxu0 0.0
        %601 = vmatpush1.msra.mxu0 %v576
        %602 = vmatprep.subr.mxu0 0.0
        %603 = vmatpush1.msra.mxu0 %v577
        %604 = vmatprep.subr.mxu0 0.0
        %605 = vmatpush1.msra.mxu0 %v578
        %606 = vmatprep.subr.mxu0 0.0
        %607 = vmatpush1.msra.mxu0 %v579
        %608 = vmatprep.subr.mxu0 0.0
        %609 = vmatpush1.msra.mxu0 %v580
        %610 = vmatprep.subr.mxu0 0.0
        %611 = vmatpush1.msra.mxu0 %v581
        %612 = vmatprep.subr.mxu0 0.0
        %613 = vmatpush1.msra.mxu0 %v582
        %614 = vmatprep.subr.mxu0 0.0
        %615 = vmatpush1.msra.mxu0 %v583
        %616 = vmatprep.subr.mxu0 0.0
        %617 = vmatpush1.msra.mxu0 0.0
        %618 = vmatprep.subr.mxu0 0.0
        %619 = vmatpush1.msra.mxu0 0.0
        %620 = vmatprep.subr.mxu0 0.0
        %621 = vmatpush1.msra.mxu0 0.0
        %622 = vmatprep.subr.mxu0 0.0
        %623 = vmatpush1.msra.mxu0 0.0
        %624 = vmatprep.subr.mxu0 0.0
        %625 = vmatpush1.msra.mxu0 0.0
        %626 = vmatprep.subr.mxu0 0.0
        %627 = vmatpush1.msra.mxu0 0.0
        %628 = vmatprep.subr.mxu0 0.0
        %629 = vmatpush1.msra.mxu0 0.0
        %630 = vmatprep.subr.mxu0 0.0
        %631 = vmatpush1.msra.mxu0 0.0
        %632 = vmatprep.subr.mxu0 0.0
        %633 = vmatpush1.msra.mxu0 0.0
        %634 = vmatprep.subr.mxu0 0.0
        %635 = vmatpush1.msra.mxu0 0.0
        %636 = vmatprep.subr.mxu0 0.0
        %637 = vmatpush1.msra.mxu0 0.0
        %638 = vmatprep.subr.mxu0 0.0
        %639 = vmatpush1.msra.mxu0 0.0
        %640 = vmatprep.subr.mxu0 0.0
        %641 = vmatpush1.msra.mxu0 0.0
        %642 = vmatprep.subr.mxu0 0.0
        %643 = vmatpush1.msra.mxu0 0.0
        %644 = vmatprep.subr.mxu0 0.0
        %645 = vmatpush1.msra.mxu0 0.0
        %646 = vmatprep.subr.mxu0 0.0
        %647 = vmatpush1.msra.mxu0 0.0
        %648 = vmatprep.mubr.f32.mxu0 0.0
        %649 = vmatmul.mubr.f32.gmra.mrb[0].mxu0 %v453
        %v650 = vpop.f32.mrb[0].mxu0
        %v651 = vadd.f32 0.0, %v650
        %v652 = vpop.f32.mrb[0].mxu0
        %653 = vmatprep.mubr.f32.mxu0 0.0
        %654 = vmatmul.mubr.f32.gmra.mrb[0].mxu0 %v454
        %v655 = vpop.f32.mrb[0].mxu0
        %v656 = vadd.f32 0.0, %v655
        %v657 = vpop.f32.mrb[0].mxu0
        %658 = vmatprep.mubr.f32.mxu0 0.0
        %659 = vmatmul.mubr.f32.gmra.mrb[0].mxu0 %v455
        %v660 = vpop.f32.mrb[0].mxu0
        %v661 = vadd.f32 0.0, %v660
        %v662 = vpop.f32.mrb[0].mxu0
        %663 = vdwg.mxu0
        %v664 = vadd.f32 %v564, %v651
        %v665 = vadd.f32 %v565, %v656
        %v666 = vadd.f32 %v566, %v661
        %667 = vst.msk [vmem:[%s563] sm:$0xff] %vm558, %v664
        %668 = vst.msk [vmem:[%s563 + $0x8] sm:$0xff] %vm558, %v665
        %669 = vst.msk [vmem:[%s563 + $0x10] sm:$0xf] %vm561, %v666
        %p670 = scmp.eq.s32.totalorder %s20, 1
        // Predicated region
        $region117: #{primary_caps_forward.1} parent=103 // pred_check
          %p671 = pneg %p670
        $region118: #{primary_caps_forward.1} parent=103 // pred_check_branch
          %673 = sbr.rel (%p671) target = $region120
        $region119: #{primary_caps_forward.1} parent=103 // pred_region
          %v674 = vld [vmem:[%s2] sm:$0xff]
          %v675 = vld [vmem:[%s2 + $0x8] sm:$0xff]
          %v676 = vld [vmem:[%s2 + $0x10] sm:$0xf]
          %v677 = vld [vmem:[%s3] sm:$0xff]
          %v678 = vld [vmem:[%s3 + $0x8] sm:$0xff]
          %v679 = vld [vmem:[#allocation2] sm:$0xff]
          %v680 = vld [vmem:[#allocation2 + $0x8] sm:$0xff]
          %v681 = vld [vmem:[#allocation2 + $0x10] sm:$0xf]
          %683 = vset.pattern.permute.xlu0 0
          %684 = vperm.xlu0 %683, %v674
          %v685 = vpop.permute.xlu0 %684
          %688 = vset.pattern.permute.xlu0 0
          %689 = vperm.xlu0 %688, %v675
          %v690 = vpop.permute.xlu0 %689
          %693 = vset.pattern.permute.xlu0 0
          %694 = vperm.xlu0 %693, %v676
          %v695 = vpop.permute.xlu0 %694
          %v697 = vadd.f32 %v679, %v685
          %v698 = vadd.f32 %v680, %v690
          %v699 = vadd.f32 %v681, %v695
          %v700 = vmul.f32 %v697, %v697
          %v701 = vmul.f32 %v698, %v698
          %v702 = vmul.f32 %v699, %v699
          %v704 = vsel %vm558, %v700, 0
          %v707 = vsel %vm558, %v701, 0
          %v710 = vsel %vm558, %v702, 0
          %712 = vmatprep.subr.mxu0 0.0
          %713 = vmatpush1.msra.mxu0 %v677
          %714 = vmatprep.subr.mxu0 0.0
          %715 = vmatpush1.msra.mxu0 %v678
          %716 = vmatprep.subr.mxu0 0.0
          %717 = vmatpush1.msra.mxu0 0.0
          %718 = vmatprep.subr.mxu0 0.0
          %719 = vmatpush1.msra.mxu0 0.0
          %720 = vmatprep.subr.mxu0 0.0
          %721 = vmatpush1.msra.mxu0 0.0
          %722 = vmatprep.subr.mxu0 0.0
          %723 = vmatpush1.msra.mxu0 0.0
          %724 = vmatprep.subr.mxu0 0.0
          %725 = vmatpush1.msra.mxu0 0.0
          %726 = vmatprep.subr.mxu0 0.0
          %727 = vmatpush1.msra.mxu0 0.0
          %728 = vmatprep.subr.mxu0 0.0
          %729 = vmatpush1.msra.mxu0 0.0
          %730 = vmatprep.subr.mxu0 0.0
          %731 = vmatpush1.msra.mxu0 0.0
          %732 = vmatprep.subr.mxu0 0.0
          %733 = vmatpush1.msra.mxu0 0.0
          %734 = vmatprep.subr.mxu0 0.0
          %735 = vmatpush1.msra.mxu0 0.0
          %736 = vmatprep.subr.mxu0 0.0
          %737 = vmatpush1.msra.mxu0 0.0
          %738 = vmatprep.subr.mxu0 0.0
          %739 = vmatpush1.msra.mxu0 0.0
          %740 = vmatprep.subr.mxu0 0.0
          %741 = vmatpush1.msra.mxu0 0.0
          %742 = vmatprep.subr.mxu0 0.0
          %743 = vmatpush1.msra.mxu0 0.0
          %744 = vmatprep.subr.mxu0 0.0
          %745 = vmatpush1.msra.mxu0 0.0
          %746 = vmatprep.subr.mxu0 0.0
          %747 = vmatpush1.msra.mxu0 0.0
          %748 = vmatprep.subr.mxu0 0.0
          %749 = vmatpush1.msra.mxu0 0.0
          %750 = vmatprep.subr.mxu0 0.0
          %751 = vmatpush1.msra.mxu0 0.0
          %752 = vmatprep.subr.mxu0 0.0
          %753 = vmatpush1.msra.mxu0 0.0
          %754 = vmatprep.subr.mxu0 0.0
          %755 = vmatpush1.msra.mxu0 0.0
          %756 = vmatprep.subr.mxu0 0.0
          %757 = vmatpush1.msra.mxu0 0.0
          %758 = vmatprep.subr.mxu0 0.0
          %759 = vmatpush1.msra.mxu0 0.0
          %760 = vmatprep.subr.mxu0 0.0
          %761 = vmatpush1.msra.mxu0 0.0
          %762 = vmatprep.subr.mxu0 0.0
          %763 = vmatpush1.msra.mxu0 0.0
          %764 = vmatprep.subr.mxu0 0.0
          %765 = vmatpush1.msra.mxu0 0.0
          %766 = vmatprep.subr.mxu0 0.0
          %767 = vmatpush1.msra.mxu0 0.0
          %768 = vmatprep.subr.mxu0 0.0
          %769 = vmatpush1.msra.mxu0 0.0
          %770 = vmatprep.subr.mxu0 0.0
          %771 = vmatpush1.msra.mxu0 0.0
          %772 = vmatprep.subr.mxu0 0.0
          %773 = vmatpush1.msra.mxu0 0.0
          %774 = vmatprep.subr.mxu0 0.0
          %775 = vmatpush1.msra.mxu0 0.0
          %776 = vmatprep.mubr.f32.mxu0 0.0
          %777 = vmatmul.mubr.f32.gmra.mrb[0].mxu0 %v704
          %v778 = vpop.f32.mrb[0].mxu0
          %v779 = vadd.f32 0.0, %v778
          %v780 = vpop.f32.mrb[0].mxu0
          %781 = vmatprep.mubr.f32.mxu0 0.0
          %782 = vmatmul.mubr.f32.gmra.mrb[0].mxu0 %v707
          %v783 = vpop.f32.mrb[0].mxu0
          %v784 = vadd.f32 0.0, %v783
          %v785 = vpop.f32.mrb[0].mxu0
          %786 = vmatprep.mubr.f32.mxu0 0.0
          %787 = vmatmul.mubr.f32.gmra.mrb[0].mxu0 %v710
          %v788 = vpop.f32.mrb[0].mxu0
          %v789 = vadd.f32 0.0, %v788
          %v790 = vpop.f32.mrb[0].mxu0
          %791 = vdwg.mxu0
          %v792 = vadd.f32 %v779, 1.0
          %v793 = vadd.f32 %v784, 1.0
          %v794 = vadd.f32 %v789, 1.0
          %v795 = vrcp.pop %v792
          %v796 = vmul.f32 %v779, %v795
          %v797 = vrcp.pop %v793
          %v798 = vmul.f32 %v784, %v797
          %v799 = vrcp.pop %v794
          %v800 = vmul.f32 %v789, %v799
          %v801 = vmul.f32 %v796, %v697
          %v802 = vmul.f32 %v798, %v698
          %v803 = vmul.f32 %v800, %v699
          %v804 = vadd.f32 %v779, 1e-12
          %v805 = vadd.f32 %v784, 1e-12
          %v806 = vadd.f32 %v789, 1e-12
          %v807 = vrsqrt.pop %v804
          %v808 = vrsqrt.pop %v805
          %v809 = vrsqrt.pop %v806
          %v810 = vmul.f32 %v801, %v807
          %v811 = vmul.f32 %v802, %v808
          %v812 = vmul.f32 %v803, %v809
          %813 = vst.msk [vmem:[%s439] sm:$0xff] %vm558, %v810
          %814 = vst.msk [vmem:[%s439 + $0x8] sm:$0xff] %vm558, %v811
          %815 = vst.msk [vmem:[%s439 + $0x10] sm:$0xf] %vm561, %v812
          %v816 = vld [vmem:[%s563] sm:$0xff]
          %v817 = vld [vmem:[%s563 + $0x8] sm:$0xff]
          %v818 = vld [vmem:[%s563 + $0x10] sm:$0xf]
          %v819 = vadd.f32 %v816, %v685
          %v820 = vadd.f32 %v817, %v690
          %v821 = vadd.f32 %v818, %v695
          %v822 = vmul.f32 %v819, %v819
          %v823 = vmul.f32 %v820, %v820
          %v824 = vmul.f32 %v821, %v821
          %v826 = vsel %vm558, %v822, 0
          %v829 = vsel %vm558, %v823, 0
          %v832 = vsel %vm558, %v824, 0
          %834 = vmatprep.subr.mxu0 0.0
          %835 = vmatpush1.msra.mxu0 %v677
          %836 = vmatprep.subr.mxu0 0.0
          %837 = vmatpush1.msra.mxu0 %v678
          %838 = vmatprep.subr.mxu0 0.0
          %839 = vmatpush1.msra.mxu0 0.0
          %840 = vmatprep.subr.mxu0 0.0
          %841 = vmatpush1.msra.mxu0 0.0
          %842 = vmatprep.subr.mxu0 0.0
          %843 = vmatpush1.msra.mxu0 0.0
          %844 = vmatprep.subr.mxu0 0.0
          %845 = vmatpush1.msra.mxu0 0.0
          %846 = vmatprep.subr.mxu0 0.0
          %847 = vmatpush1.msra.mxu0 0.0
          %848 = vmatprep.subr.mxu0 0.0
          %849 = vmatpush1.msra.mxu0 0.0
          %850 = vmatprep.subr.mxu0 0.0
          %851 = vmatpush1.msra.mxu0 0.0
          %852 = vmatprep.subr.mxu0 0.0
          %853 = vmatpush1.msra.mxu0 0.0
          %854 = vmatprep.subr.mxu0 0.0
          %855 = vmatpush1.msra.mxu0 0.0
          %856 = vmatprep.subr.mxu0 0.0
          %857 = vmatpush1.msra.mxu0 0.0
          %858 = vmatprep.subr.mxu0 0.0
          %859 = vmatpush1.msra.mxu0 0.0
          %860 = vmatprep.subr.mxu0 0.0
          %861 = vmatpush1.msra.mxu0 0.0
          %862 = vmatprep.subr.mxu0 0.0
          %863 = vmatpush1.msra.mxu0 0.0
          %864 = vmatprep.subr.mxu0 0.0
          %865 = vmatpush1.msra.mxu0 0.0
          %866 = vmatprep.subr.mxu0 0.0
          %867 = vmatpush1.msra.mxu0 0.0
          %868 = vmatprep.subr.mxu0 0.0
          %869 = vmatpush1.msra.mxu0 0.0
          %870 = vmatprep.subr.mxu0 0.0
          %871 = vmatpush1.msra.mxu0 0.0
          %872 = vmatprep.subr.mxu0 0.0
          %873 = vmatpush1.msra.mxu0 0.0
          %874 = vmatprep.subr.mxu0 0.0
          %875 = vmatpush1.msra.mxu0 0.0
          %876 = vmatprep.subr.mxu0 0.0
          %877 = vmatpush1.msra.mxu0 0.0
          %878 = vmatprep.subr.mxu0 0.0
          %879 = vmatpush1.msra.mxu0 0.0
          %880 = vmatprep.subr.mxu0 0.0
          %881 = vmatpush1.msra.mxu0 0.0
          %882 = vmatprep.subr.mxu0 0.0
          %883 = vmatpush1.msra.mxu0 0.0
          %884 = vmatprep.subr.mxu0 0.0
          %885 = vmatpush1.msra.mxu0 0.0
          %886 = vmatprep.subr.mxu0 0.0
          %887 = vmatpush1.msra.mxu0 0.0
          %888 = vmatprep.subr.mxu0 0.0
          %889 = vmatpush1.msra.mxu0 0.0
          %890 = vmatprep.subr.mxu0 0.0
          %891 = vmatpush1.msra.mxu0 0.0
          %892 = vmatprep.subr.mxu0 0.0
          %893 = vmatpush1.msra.mxu0 0.0
          %894 = vmatprep.subr.mxu0 0.0
          %895 = vmatpush1.msra.mxu0 0.0
          %896 = vmatprep.subr.mxu0 0.0
          %897 = vmatpush1.msra.mxu0 0.0
          %898 = vmatprep.mubr.f32.mxu0 0.0
          %899 = vmatmul.mubr.f32.gmra.mrb[0].mxu0 %v826
          %v900 = vpop.f32.mrb[0].mxu0
          %v901 = vadd.f32 0.0, %v900
          %v902 = vpop.f32.mrb[0].mxu0
          %903 = vmatprep.mubr.f32.mxu0 0.0
          %904 = vmatmul.mubr.f32.gmra.mrb[0].mxu0 %v829
          %v905 = vpop.f32.mrb[0].mxu0
          %v906 = vadd.f32 0.0, %v905
          %v907 = vpop.f32.mrb[0].mxu0
          %908 = vmatprep.mubr.f32.mxu0 0.0
          %909 = vmatmul.mubr.f32.gmra.mrb[0].mxu0 %v832
          %v910 = vpop.f32.mrb[0].mxu0
          %v911 = vadd.f32 0.0, %v910
          %v912 = vpop.f32.mrb[0].mxu0
          %913 = vdwg.mxu0
          %v914 = vadd.f32 %v901, 1.0
          %v915 = vadd.f32 %v906, 1.0
          %v916 = vadd.f32 %v911, 1.0
          %v917 = vrcp.pop %v914
          %v918 = vmul.f32 %v901, %v917
          %v919 = vrcp.pop %v915
          %v920 = vmul.f32 %v906, %v919
          %v921 = vrcp.pop %v916
          %v922 = vmul.f32 %v911, %v921
          %v923 = vmul.f32 %v918, %v819
          %v924 = vmul.f32 %v920, %v820
          %v925 = vmul.f32 %v922, %v821
          %v926 = vadd.f32 %v901, 1e-12
          %v927 = vadd.f32 %v906, 1e-12
          %v928 = vadd.f32 %v911, 1e-12
          %v929 = vrsqrt.pop %v926
          %v930 = vrsqrt.pop %v927
          %v931 = vrsqrt.pop %v928
          %v932 = vmul.f32 %v923, %v929
          %v933 = vmul.f32 %v924, %v930
          %v934 = vmul.f32 %v925, %v931
          %s935 = scalar_lea.vmem %s439, 24
          %936 = vst.msk [vmem:[%s935] sm:$0xff] %vm558, %v932
          %937 = vst.msk [vmem:[%s935 + $0x8] sm:$0xff] %vm558, %v933
          %938 = vst.msk [vmem:[%s935 + $0x10] sm:$0xf] %vm561, %v934
        $region120: #{primary_caps_forward.1} parent=103 // pred_fallthru
          _
        %s939 = smul.u32 2, %s19
        %p940 = scmp.lt.s32.totalorder %s939, 1
        %s941 = scalar_select %p940, %s939, 1
        %s942 = smul.addr %s941, 3
        %s943 = smul.addr %s942, 8
        %s944 = scalar_lea.vmem %s4, %s943
        // Predicated region
        $region121: #{primary_caps_forward.1} parent=103 // pred_check
          %p945 = pneg %p141
        $region122: #{primary_caps_forward.1} parent=103 // pred_check_branch
          %947 = sbr.rel (%p945) target = $region124
        $region123: #{primary_caps_forward.1} parent=103 // pred_region
          %s948 = smul.u32 2, %s19
        $region124: #{primary_caps_forward.1} parent=103 // pred_fallthru
          _
        // Predicated region
        $region125: #{primary_caps_forward.1} parent=103 // pred_check
          %p949 = pneg %p141
        $region126: #{primary_caps_forward.1} parent=103 // pred_check_branch
          %951 = sbr.rel (%p949) target = $region128
        $region127: #{primary_caps_forward.1} parent=103 // pred_region
          %s952 = smul.u32 2, %s19
          %p953 = scmp.lt.s32.totalorder %s952, 1
          %s954 = scalar_select %p953, %s952, 1
          %s955 = smul.addr %s954, 3
          %s956 = smul.addr %s955, 8
          %s957 = scalar_lea.vmem %s4, %s956
        $region128: #{primary_caps_forward.1} parent=103 // pred_fallthru
          _
      $region104: #{primary_caps_forward.1} parent=5 // pred_fallthru
        _
      %p958 = scmp.le.s32.totalorder 2, %s10
      // Predicated region
      $region129: #{primary_caps_forward.1} parent=5 // pred_check
        %p959 = pneg %p958
      $region130: #{primary_caps_forward.1} parent=5 // pred_check_branch
        %961 = sbr.rel (%p959) target = $region132
      $region131: #{primary_caps_forward.1} parent=5 // pred_region
        %s962 = ssub.s32 %s10, 2
      $region132: #{primary_caps_forward.1} parent=5 // pred_fallthru
        _
    $region6: #{primary_caps_forward.1} parent=1 // loop_footer
      %s14 = sadd.s32 1, %s10
    $region7: #{primary_caps_forward.1} parent=1 // loop_footer_branch
      %9 = sbr.rel target = $region3
    $region8: #{primary_caps_forward.1} parent=1 // loop_exit
      _

</llo_original>
